<compile_context>
chip_gen: v7x
topology: tpu7x:2x2x1
jax: 0.10.0
libtpu: 0.0.40
codegen_flags: <defaults>
</compile_context>

<pallas_src>
import functools

import jax
import jax.numpy as jnp
from jax.experimental import pallas as pl
from jax.experimental.pallas import tpu as pltpu


def _word_attn_kernel(x_ref, w_ref, b_ref, o_ref, *, block_b, seq, hidden):
    # x_ref: (block_b * seq, Din)   flattened rows of this batch block
    # w_ref: (Din, 3*hidden)        fused [Wq | Wk | Wv]
    # b_ref: (1, 3*hidden)          fused [bq | bk | bv]
    # o_ref: (block_b, seq, hidden)

    # Single wide projection matmul (f32 accumulate; inputs keep native dtype).
    qkv = jnp.dot(x_ref[...], w_ref[...], preferred_element_type=jnp.float32)
    qkv = qkv + b_ref[...].astype(jnp.float32)
    # Split only the leading (sublane) dim; minor dim untouched -> cheap.
    qkv = qkv.reshape(block_b, seq, 3 * hidden)
    q = qkv[:, :, :hidden]
    k = qkv[:, :, hidden:2 * hidden]
    v = qkv[:, :, 2 * hidden:]

    # scores = q @ k^T, batched over the block. The contraction over the
    # feature dim is expressed directly -- no transposed copy of k.
    s = jnp.einsum("bqh,bkh->bqk", q, k, preferred_element_type=jnp.float32)
    # NOTE: no 1/sqrt(hidden) scaling -- matches the PyTorch module exactly.
    s = s - jnp.max(s, axis=-1, keepdims=True)            # stable softmax
    p = jnp.exp(s)
    p = p * pl.reciprocal(jnp.sum(p, axis=-1, keepdims=True), approx=True)

    out = jnp.einsum("bqk,bkh->bqh", p, v, preferred_element_type=jnp.float32)
    o_ref[...] = out.astype(o_ref.dtype)


def word_attention(x, wq, bq, wk, bk, wv, bv, *, block_b=None):
    """x: (B, S, Din). wq/wk/wv: (Din, H) (PyTorch weight already transposed),
    bq/bk/bv: (1, H). Returns (B, S, H) float32."""
    B, S, Din = x.shape
    H = wq.shape[1]
    assert wk.shape == (Din, H) and wv.shape == (Din, H)

    # Fuse the three projections into one wide matmul.
    w_qkv = jnp.concatenate([wq, wk, wv], axis=1)          # (Din, 3H)
    b_qkv = jnp.concatenate([bq, bk, bv], axis=1)          # (1, 3H)

    # Batch-block size: aim for >= 256 rows in the projection matmul (fills the
    # MXU M dim on v6e/v7x) while dividing B evenly.
    if block_b is None:
        block_b = max(1, min(B, pl.cdiv(256, S)))
        while B % block_b:
            block_b -= 1
    assert B % block_b == 0

    x2 = x.reshape(B * S, Din)                             # rows flattened in wrapper
    grid = (B // block_b,)

    kernel = functools.partial(_word_attn_kernel, block_b=block_b, seq=S, hidden=H)

    return pl.pallas_call(
        kernel,
        out_shape=jax.ShapeDtypeStruct((B, S, H), jnp.float32),
        grid_spec=pltpu.PrefetchScalarGridSpec(
            num_scalar_prefetch=0,
            grid=grid,
            in_specs=[
                pl.BlockSpec((block_b * S, Din), lambda i: (i, 0)),   # x rows
                pl.BlockSpec((Din, 3 * H), lambda i: (0, 0)),         # fused W (resident)
                pl.BlockSpec((1, 3 * H), lambda i: (0, 0)),           # fused bias
            ],
            out_specs=pl.BlockSpec((block_b, S, H), lambda i: (i, 0, 0)),
        ),
        compiler_params=pltpu.CompilerParams(
            dimension_semantics=("parallel",),
            vmem_limit_bytes=32 * 1024 * 1024,   # explicit; safe on v5e/v6e/v7x
        ),
    )(x2, w_qkv, b_qkv)


def _reference(x, wq, bq, wk, bk, wv, bv):
    q = x @ wq + bq
    k = x @ wk + bk
    v = x @ wv + bv
    s = q @ jnp.swapaxes(k, -2, -1)
    s = jax.nn.softmax(s, axis=-1)
    return s @ v


if __name__ == "__main__":
    B, S, Din, H = 2, 8, 16, 32

    key = jax.random.PRNGKey(0)
    kx, kq, kbq, kk, kbk, kv, kbv = jax.random.split(key, 7)

    x = jax.random.normal(kx, (B, S, Din), dtype=jnp.float32)

    # Deterministic parameter init (mimics nn.Linear's uniform(+-1/sqrt(fan_in))).
    bound = 1.0 / (Din ** 0.5)
    # PyTorch stores W as (H, Din); we keep x @ W^T by generating (Din, H) directly.
    wq = jax.random.uniform(kq, (Din, H), minval=-bound, maxval=bound, dtype=jnp.float32)
    bq = jax.random.uniform(kbq, (1, H), minval=-bound, maxval=bound, dtype=jnp.float32)
    wk = jax.random.uniform(kk, (Din, H), minval=-bound, maxval=bound, dtype=jnp.float32)
    bk = jax.random.uniform(kbk, (1, H), minval=-bound, maxval=bound, dtype=jnp.float32)
    wv = jax.random.uniform(kv, (Din, H), minval=-bound, maxval=bound, dtype=jnp.float32)
    bv = jax.random.uniform(kbv, (1, H), minval=-bound, maxval=bound, dtype=jnp.float32)

    out = word_attention(x, wq, bq, wk, bk, wv, bv)
    out = jax.block_until_ready(out)

    ref = _reference(x, wq, bq, wk, bk, wv, bv)
    assert out.shape == (B, S, H), out.shape
    # Tolerance loosened from 1e-5 because the softmax denominator now uses the
    # hardware-approximate reciprocal (EUP vrcp), per the perf review.
    max_err = float(jnp.max(jnp.abs(out - ref)))
    assert jnp.allclose(out, ref, atol=5e-3, rtol=5e-3), max_err

    print("KERNEL_OK")
</pallas_src>

<mosaic_0001>
module attributes {stable_mosaic.version = 11 : i64} {
  func.func @_word_attn_kernel(%arg0: i32, %arg1: memref<16x16xf32, #tpu.memory_space<vmem>>, %arg2: memref<16x96xf32, #tpu.memory_space<vmem>>, %arg3: memref<1x96xf32, #tpu.memory_space<vmem>>, %arg4: memref<2x8x32xf32, #tpu.memory_space<vmem>>) attributes {dimension_semantics = [#tpu.dimension_semantics<parallel>], iteration_bounds = array<i64: 1>, scalar_prefetch = 0 : i64, scratch_operands = 0 : i64, tpu.core_type = #tpu.core_type<tc>, window_params = [{transform_indices = @transform_0, window_bounds = array<i64: 16, 16>}, {pipeline_mode = #tpu.pipeline_mode<synchronous>, transform_indices = @transform_1, window_bounds = array<i64: 16, 96>}, {pipeline_mode = #tpu.pipeline_mode<synchronous>, transform_indices = @transform_2, window_bounds = array<i64: 1, 96>}, {transform_indices = @transform_3, window_bounds = array<i64: 2, 8, 32>}]} {
    %c0 = arith.constant 0 : index
    %c0_0 = arith.constant 0 : index
    %0 = vector.load %arg1[%c0, %c0_0] : memref<16x16xf32, #tpu.memory_space<vmem>>, vector<16x16xf32>
    %c0_1 = arith.constant 0 : index
    %c0_2 = arith.constant 0 : index
    %1 = vector.load %arg2[%c0_1, %c0_2] : memref<16x96xf32, #tpu.memory_space<vmem>>, vector<16x96xf32>
    %cst = arith.constant dense<0.000000e+00> : vector<16x96xf32>
    %2 = tpu.matmul %0, %1, %cst {dimension_numbers = #tpu.dot_dimension_numbers<[1], [0], [0], [1], [0, 0, 1, 1], [], []>} : vector<16x16xf32>, vector<16x96xf32>, vector<16x96xf32> -> vector<16x96xf32>
    %c0_3 = arith.constant 0 : index
    %c0_4 = arith.constant 0 : index
    %3 = vector.load %arg3[%c0_3, %c0_4] : memref<1x96xf32, #tpu.memory_space<vmem>>, vector<1x96xf32>
    %4 = vector.broadcast %3 : vector<1x96xf32> to vector<16x96xf32>
    %5 = arith.addf %2, %4 : vector<16x96xf32>
    %6 = vector.shape_cast %5 : vector<16x96xf32> to vector<2x8x96xf32>
    %7 = vector.extract_strided_slice %6 {offsets = [0, 0, 0], sizes = [2, 8, 32], strides = [1, 1, 1]} : vector<2x8x96xf32> to vector<2x8x32xf32>
    %8 = vector.extract_strided_slice %6 {offsets = [0, 0, 32], sizes = [2, 8, 32], strides = [1, 1, 1]} : vector<2x8x96xf32> to vector<2x8x32xf32>
    %9 = vector.extract_strided_slice %6 {offsets = [0, 0, 64], sizes = [2, 8, 32], strides = [1, 1, 1]} : vector<2x8x96xf32> to vector<2x8x32xf32>
    "tpu.trace_start"() <{level = 10 : i32, message = "bqh,bkh->bqk"}> : () -> ()
    %cst_5 = arith.constant dense<0.000000e+00> : vector<2x8x8xf32>
    %10 = tpu.matmul %7, %8, %cst_5 {dimension_numbers = #tpu.dot_dimension_numbers<[2], [2], [1], [1], [0, 0, 0, 1, 1, 1], [0], [0]>} : vector<2x8x32xf32>, vector<2x8x32xf32>, vector<2x8x8xf32> -> vector<2x8x8xf32>
    "tpu.trace_stop"() : () -> ()
    %cst_6 = arith.constant dense<0xFF800000> : vector<2x8xf32>
    %11 = vector.multi_reduction <maximumf>, %10, %cst_6 [2] : vector<2x8x8xf32> to vector<2x8xf32>
    %12 = vector.shape_cast %11 : vector<2x8xf32> to vector<2x8x1xf32>
    %13 = vector.broadcast %12 : vector<2x8x1xf32> to vector<2x8x8xf32>
    %14 = arith.subf %10, %13 : vector<2x8x8xf32>
    %15 = math.exp %14 : vector<2x8x8xf32>
    %cst_7 = arith.constant dense<0.000000e+00> : vector<2x8xf32>
    %16 = vector.multi_reduction <add>, %15, %cst_7 [2] : vector<2x8x8xf32> to vector<2x8xf32>
    %17 = vector.shape_cast %16 : vector<2x8xf32> to vector<2x8x1xf32>
    %18 = tpu.reciprocal %17 {approx = true} : vector<2x8x1xf32> -> vector<2x8x1xf32>
    %19 = vector.broadcast %18 : vector<2x8x1xf32> to vector<2x8x8xf32>
    %20 = arith.mulf %15, %19 : vector<2x8x8xf32>
    "tpu.trace_start"() <{level = 10 : i32, message = "bqk,bkh->bqh"}> : () -> ()
    %cst_8 = arith.constant dense<0.000000e+00> : vector<2x8x32xf32>
    %21 = tpu.matmul %20, %9, %cst_8 {dimension_numbers = #tpu.dot_dimension_numbers<[2], [1], [1], [2], [0, 0, 0, 1, 1, 2], [0], [0]>} : vector<2x8x8xf32>, vector<2x8x32xf32>, vector<2x8x32xf32> -> vector<2x8x32xf32>
    "tpu.trace_stop"() : () -> ()
    %c0_9 = arith.constant 0 : index
    %c0_10 = arith.constant 0 : index
    %c0_11 = arith.constant 0 : index
    %22 = vector.load %arg4[%c0_9, %c0_10, %c0_11] : memref<2x8x32xf32, #tpu.memory_space<vmem>>, vector<2x8x32xf32>
    tpu.vector_store %arg4[%c0_9, %c0_10, %c0_11], %21 {strides = array<i32>} : memref<2x8x32xf32, #tpu.memory_space<vmem>>, vector<2x8x32xf32>,
    return
  }
  func.func @transform_0(%arg0: i32) -> (i32, i32) {
    %c0_i32 = arith.constant 0 : i32
    %c0_i32_0 = arith.constant 0 : i32
    return %arg0, %c0_i32 : i32, i32
  }
  func.func @transform_1(%arg0: i32) -> (i32, i32) {
    %c0_i32 = arith.constant 0 : i32
    %c0_i32_0 = arith.constant 0 : i32
    %c0_i32_1 = arith.constant 0 : i32
    return %c0_i32, %c0_i32_0 : i32, i32
  }
  func.func @transform_2(%arg0: i32) -> (i32, i32) {
    %c0_i32 = arith.constant 0 : i32
    %c0_i32_0 = arith.constant 0 : i32
    %c0_i32_1 = arith.constant 0 : i32
    return %c0_i32, %c0_i32_0 : i32, i32
  }
  func.func @transform_3(%arg0: i32) -> (i32, i32, i32) {
    %c0_i32 = arith.constant 0 : i32
    %c0_i32_0 = arith.constant 0 : i32
    %c0_i32_1 = arith.constant 0 : i32
    return %arg0, %c0_i32, %c0_i32_0 : i32, i32, i32
  }
}

</mosaic_0001>

<llo_original>
// kernel: tpu_custom_call.1
$region0: #{tpu_custom_call.1}
  #allocation0 [shape = 'u32[]', space=smem, size = 0x4, offset = 0x4, fixed_abs, tag = 'smem constant byte address 0x4 - core index']
  #allocation1 [shape = 'u32[144,128]{1,0:T(1,128)}', space=vmem, size = 0x12000, scoped, tag = 'internal scratch']
  %s0 = inlined_call_operand.hbm [shape: f32[16,16], index: 0, kind: input, shape index: {}]
  %s1 = inlined_call_operand.hbm [shape: f32[16,96], index: 1, kind: input, shape index: {}]
  %s2 = inlined_call_operand.vmem [shape: f32[1,96], index: 2, kind: input, shape index: {}]
  %s3 = inlined_call_operand.hbm [shape: f32[2,8,32], index: 3, kind: output, shape index: {}]
  %s4 = sld [smem:[#allocation0]]
  $region30: #{tpu_custom_call.1} parent=0
    _
  %s6 = ssub.s32 1, %s4
  %s7 = scalar_select 0, %s6, %s4
  $region1: #{tpu_custom_call.1} parent=0
    #allocation2 [shape = 'u8[8192]{0}', space=vmem, size = 0x2000, scoped, tag = 'input window, operand 0, single buffered']
    #allocation3 [shape = 's32[1]{0}', space=sflag, size = 0x4, scoped, tag = 'scoped memory for tpu_custom_call.1']
    #allocation4 [shape = 's32[1]{0}', space=sflag, size = 0x4, scoped, tag = 'scoped memory for tpu_custom_call.1']
    #allocation5 [shape = 'u8[8192]{0}', space=vmem, size = 0x2000, scoped, tag = 'input window, operand 1, single buffered']
    #allocation6 [shape = 's32[1]{0}', space=sflag, size = 0x4, scoped, tag = 'scoped memory for tpu_custom_call.1']
    #allocation7 [shape = 'u8[8192]{0}', space=vmem, size = 0x2000, scoped, tag = 'output window, operand 0, single buffered']
    %8 = vsyncpa [#allocation3], 0
    %9 = vsyncpa [#allocation6], 0
    %10 = vsyncpa [#allocation4], 0
    // Predicated region
    $region2: #{tpu_custom_call.1} parent=1 // pred_check
      _
    $region3: #{tpu_custom_call.1} parent=1 // pred_check_branch
      %12 = sbr.rel (0) target = $region5
    $region4: #{tpu_custom_call.1} parent=1 // pred_region
      %s14 = ssub.s32 256, 256
      %15 = vsyncadd [#allocation3], %s14
      %s16 = sshll.u32 [#allocation2], 4
      %s17 = int_to_ptr.vmem [resolvable:$true] %s16
      %22 = dma.hbm_to_vmem [thread:$0]  %s0, 256, %s17, [#allocation3], 128, 128, 8
    $region5: #{tpu_custom_call.1} parent=1 // pred_fallthru
      _
    // Predicated region
    $region6: #{tpu_custom_call.1} parent=1 // pred_check
      _
    $region7: #{tpu_custom_call.1} parent=1 // pred_check_branch
      %24 = sbr.rel (0) target = $region9
    $region8: #{tpu_custom_call.1} parent=1 // pred_region
      %s26 = ssub.s32 256, 256
      %27 = vsyncadd [#allocation6], %s26
      %s28 = sshll.u32 [#allocation5], 4
      %s29 = int_to_ptr.vmem [resolvable:$true] %s28
      %34 = dma.hbm_to_vmem [thread:$0]  %s1, 256, %s29, [#allocation6], 128, 128, 8
    $region9: #{tpu_custom_call.1} parent=1 // pred_fallthru
      _
    // Predicated region
    $region10: #{tpu_custom_call.1} parent=1 // pred_check
      _
    $region11: #{tpu_custom_call.1} parent=1 // pred_check_branch
      %36 = sbr.rel (0) target = $region13
    $region12: #{tpu_custom_call.1} parent=1 // pred_region
      _
    $region13: #{tpu_custom_call.1} parent=1 // pred_fallthru
      _
    // Predicated region
    $region14: #{tpu_custom_call.1} parent=1 // pred_check
      _
    $region15: #{tpu_custom_call.1} parent=1 // pred_check_branch
      %38 = sbr.rel (0) target = $region17
    $region16: #{tpu_custom_call.1} parent=1 // pred_region
      %39 = dma.done [#allocation3], 256
    $region17: #{tpu_custom_call.1} parent=1 // pred_fallthru
      _
    // Predicated region
    $region18: #{tpu_custom_call.1} parent=1 // pred_check
      _
    $region19: #{tpu_custom_call.1} parent=1 // pred_check_branch
      %41 = sbr.rel (0) target = $region21
    $region20: #{tpu_custom_call.1} parent=1 // pred_region
      %42 = dma.done [#allocation6], 256
    $region21: #{tpu_custom_call.1} parent=1 // pred_fallthru
      _
    %v43 = vld [vmem:[#allocation2] sm:$0xff]
    %v44 = vld [vmem:[#allocation2 + $0x8] sm:$0xff]
    %v45 = vld [vmem:[#allocation5] sm:$0xff]
    %v46 = vld [vmem:[#allocation5 + $0x8] sm:$0xff]
    %v47 = vld [vmem:[%s2] sm:$0x1]
    %v49 = vlaneseq
    %v50 = vshrl.u32 %v49, 7
    %v51 = vsub.s32 0, %v50
    %v52 = vrot.slane %v47, %v51
    %vm54 = vcmask 130048
    %v56 = vsel %vm54, %v43, 0
    %v59 = vsel %vm54, %v44, 0
    %61 = vmatprep.subr.mxu0 0.0
    %62 = vmatpush1.msra.mxu0 %v45
    %63 = vmatprep.subr.mxu0 0.0
    %64 = vmatpush1.msra.mxu0 %v46
    %65 = vmatprep.subr.mxu0 0.0
    %66 = vmatpush1.msra.mxu0 0.0
    %67 = vmatprep.subr.mxu0 0.0
    %68 = vmatpush1.msra.mxu0 0.0
    %69 = vmatprep.subr.mxu0 0.0
    %70 = vmatpush1.msra.mxu0 0.0
    %71 = vmatprep.subr.mxu0 0.0
    %72 = vmatpush1.msra.mxu0 0.0
    %73 = vmatprep.subr.mxu0 0.0
    %74 = vmatpush1.msra.mxu0 0.0
    %75 = vmatprep.subr.mxu0 0.0
    %76 = vmatpush1.msra.mxu0 0.0
    %77 = vmatprep.subr.mxu0 0.0
    %78 = vmatpush1.msra.mxu0 0.0
    %79 = vmatprep.subr.mxu0 0.0
    %80 = vmatpush1.msra.mxu0 0.0
    %81 = vmatprep.subr.mxu0 0.0
    %82 = vmatpush1.msra.mxu0 0.0
    %83 = vmatprep.subr.mxu0 0.0
    %84 = vmatpush1.msra.mxu0 0.0
    %85 = vmatprep.subr.mxu0 0.0
    %86 = vmatpush1.msra.mxu0 0.0
    %87 = vmatprep.subr.mxu0 0.0
    %88 = vmatpush1.msra.mxu0 0.0
    %89 = vmatprep.subr.mxu0 0.0
    %90 = vmatpush1.msra.mxu0 0.0
    %91 = vmatprep.subr.mxu0 0.0
    %92 = vmatpush1.msra.mxu0 0.0
    %93 = vmatprep.subr.mxu0 0.0
    %94 = vmatpush1.msra.mxu0 0.0
    %95 = vmatprep.subr.mxu0 0.0
    %96 = vmatpush1.msra.mxu0 0.0
    %97 = vmatprep.subr.mxu0 0.0
    %98 = vmatpush1.msra.mxu0 0.0
    %99 = vmatprep.subr.mxu0 0.0
    %100 = vmatpush1.msra.mxu0 0.0
    %101 = vmatprep.subr.mxu0 0.0
    %102 = vmatpush1.msra.mxu0 0.0
    %103 = vmatprep.subr.mxu0 0.0
    %104 = vmatpush1.msra.mxu0 0.0
    %105 = vmatprep.subr.mxu0 0.0
    %106 = vmatpush1.msra.mxu0 0.0
    %107 = vmatprep.subr.mxu0 0.0
    %108 = vmatpush1.msra.mxu0 0.0
    %109 = vmatprep.subr.mxu0 0.0
    %110 = vmatpush1.msra.mxu0 0.0
    %111 = vmatprep.subr.mxu0 0.0
    %112 = vmatpush1.msra.mxu0 0.0
    %113 = vmatprep.subr.mxu0 0.0
    %114 = vmatpush1.msra.mxu0 0.0
    %115 = vmatprep.subr.mxu0 0.0
    %116 = vmatpush1.msra.mxu0 0.0
    %117 = vmatprep.subr.mxu0 0.0
    %118 = vmatpush1.msra.mxu0 0.0
    %119 = vmatprep.subr.mxu0 0.0
    %120 = vmatpush1.msra.mxu0 0.0
    %121 = vmatprep.subr.mxu0 0.0
    %122 = vmatpush1.msra.mxu0 0.0
    %123 = vmatprep.subr.mxu0 0.0
    %124 = vmatpush1.msra.mxu0 0.0
    %125 = vmatprep.mubr.f32.mxu0 0.0
    %126 = vmatmul.mubr.f32.gmra.mrb[0].mxu0 %v56
    %v127 = vpop.f32.mrb[0].mxu0
    %v128 = vadd.f32 %v52, %v127
    %v129 = vpop.f32.mrb[0].mxu0
    %130 = vmatprep.mubr.f32.mxu0 0.0
    %131 = vmatmul.mubr.f32.gmra.mrb[0].mxu0 %v59
    %v132 = vpop.f32.mrb[0].mxu0
    %v133 = vadd.f32 %v52, %v132
    %v134 = vpop.f32.mrb[0].mxu0
    %135 = vdwg.mxu0
    %137 = vrot.lane.b32.xlu0 %v128, 96
    %v138 = vpop.permute.xlu0 %137
    %vm139 = vcmask 261120
    %v140 = vsel %vm139, %v128, 0
    %v142 = vsel %vm139, %v138, 0
    %144 = vmatprep.subr.mxu0 0.0
    %145 = vmatpush1.xpose.msra.mxu0 %v142
    %146 = vmatprep.subr.mxu0 0.0
    %147 = vmatpush1.xpose.msra.mxu0 0.0
    %148 = vmatprep.subr.mxu0 0.0
    %149 = vmatpush1.xpose.msra.mxu0 0.0
    %150 = vmatprep.subr.mxu0 0.0
    %151 = vmatpush1.xpose.msra.mxu0 0.0
    %152 = vmatprep.subr.mxu0 0.0
    %153 = vmatpush1.xpose.msra.mxu0 0.0
    %154 = vmatprep.subr.mxu0 0.0
    %155 = vmatpush1.xpose.msra.mxu0 0.0
    %156 = vmatprep.subr.mxu0 0.0
    %157 = vmatpush1.xpose.msra.mxu0 0.0
    %158 = vmatprep.subr.mxu0 0.0
    %159 = vmatpush1.xpose.msra.mxu0 0.0
    %160 = vmatprep.subr.mxu0 0.0
    %161 = vmatpush1.xpose.msra.mxu0 0.0
    %162 = vmatprep.subr.mxu0 0.0
    %163 = vmatpush1.xpose.msra.mxu0 0.0
    %164 = vmatprep.subr.mxu0 0.0
    %165 = vmatpush1.xpose.msra.mxu0 0.0
    %166 = vmatprep.subr.mxu0 0.0
    %167 = vmatpush1.xpose.msra.mxu0 0.0
    %168 = vmatprep.subr.mxu0 0.0
    %169 = vmatpush1.xpose.msra.mxu0 0.0
    %170 = vmatprep.subr.mxu0 0.0
    %171 = vmatpush1.xpose.msra.mxu0 0.0
    %172 = vmatprep.subr.mxu0 0.0
    %173 = vmatpush1.xpose.msra.mxu0 0.0
    %174 = vmatprep.subr.mxu0 0.0
    %175 = vmatpush1.xpose.msra.mxu0 0.0
    %176 = vmatprep.subr.mxu0 0.0
    %177 = vmatpush1.xpose.msra.mxu0 0.0
    %178 = vmatprep.subr.mxu0 0.0
    %179 = vmatpush1.xpose.msra.mxu0 0.0
    %180 = vmatprep.subr.mxu0 0.0
    %181 = vmatpush1.xpose.msra.mxu0 0.0
    %182 = vmatprep.subr.mxu0 0.0
    %183 = vmatpush1.xpose.msra.mxu0 0.0
    %184 = vmatprep.subr.mxu0 0.0
    %185 = vmatpush1.xpose.msra.mxu0 0.0
    %186 = vmatprep.subr.mxu0 0.0
    %187 = vmatpush1.xpose.msra.mxu0 0.0
    %188 = vmatprep.subr.mxu0 0.0
    %189 = vmatpush1.xpose.msra.mxu0 0.0
    %190 = vmatprep.subr.mxu0 0.0
    %191 = vmatpush1.xpose.msra.mxu0 0.0
    %192 = vmatprep.subr.mxu0 0.0
    %193 = vmatpush1.xpose.msra.mxu0 0.0
    %194 = vmatprep.subr.mxu0 0.0
    %195 = vmatpush1.xpose.msra.mxu0 0.0
    %196 = vmatprep.subr.mxu0 0.0
    %197 = vmatpush1.xpose.msra.mxu0 0.0
    %198 = vmatprep.subr.mxu0 0.0
    %199 = vmatpush1.xpose.msra.mxu0 0.0
    %200 = vmatprep.subr.mxu0 0.0
    %201 = vmatpush1.xpose.msra.mxu0 0.0
    %202 = vmatprep.subr.mxu0 0.0
    %203 = vmatpush1.xpose.msra.mxu0 0.0
    %204 = vmatprep.subr.mxu0 0.0
    %205 = vmatpush1.xpose.msra.mxu0 0.0
    %206 = vmatprep.subr.mxu0 0.0
    %207 = vmatpush1.xpose.msra.mxu0 0.0
    %208 = vmatprep.mubr.f32.mxu0 0.0
    %209 = vmatmul.mubr.f32.gmra.mrb[0].mxu0 %v140
    %v210 = vpop.f32.mrb[0].mxu0
    %v211 = vadd.f32 0.0, %v210
    %v212 = vpop.f32.mrb[0].mxu0
    %213 = vdwg.mxu0
    %215 = vrot.lane.b32.xlu0 %v133, 96
    %v216 = vpop.permute.xlu0 %215
    %v217 = vsel %vm139, %v133, 0
    %v219 = vsel %vm139, %v216, 0
    %221 = vmatprep.subr.mxu0 0.0
    %222 = vmatpush1.xpose.msra.mxu0 %v219
    %223 = vmatprep.subr.mxu0 0.0
    %224 = vmatpush1.xpose.msra.mxu0 0.0
    %225 = vmatprep.subr.mxu0 0.0
    %226 = vmatpush1.xpose.msra.mxu0 0.0
    %227 = vmatprep.subr.mxu0 0.0
    %228 = vmatpush1.xpose.msra.mxu0 0.0
    %229 = vmatprep.subr.mxu0 0.0
    %230 = vmatpush1.xpose.msra.mxu0 0.0
    %231 = vmatprep.subr.mxu0 0.0
    %232 = vmatpush1.xpose.msra.mxu0 0.0
    %233 = vmatprep.subr.mxu0 0.0
    %234 = vmatpush1.xpose.msra.mxu0 0.0
    %235 = vmatprep.subr.mxu0 0.0
    %236 = vmatpush1.xpose.msra.mxu0 0.0
    %237 = vmatprep.subr.mxu0 0.0
    %238 = vmatpush1.xpose.msra.mxu0 0.0
    %239 = vmatprep.subr.mxu0 0.0
    %240 = vmatpush1.xpose.msra.mxu0 0.0
    %241 = vmatprep.subr.mxu0 0.0
    %242 = vmatpush1.xpose.msra.mxu0 0.0
    %243 = vmatprep.subr.mxu0 0.0
    %244 = vmatpush1.xpose.msra.mxu0 0.0
    %245 = vmatprep.subr.mxu0 0.0
    %246 = vmatpush1.xpose.msra.mxu0 0.0
    %247 = vmatprep.subr.mxu0 0.0
    %248 = vmatpush1.xpose.msra.mxu0 0.0
    %249 = vmatprep.subr.mxu0 0.0
    %250 = vmatpush1.xpose.msra.mxu0 0.0
    %251 = vmatprep.subr.mxu0 0.0
    %252 = vmatpush1.xpose.msra.mxu0 0.0
    %253 = vmatprep.subr.mxu0 0.0
    %254 = vmatpush1.xpose.msra.mxu0 0.0
    %255 = vmatprep.subr.mxu0 0.0
    %256 = vmatpush1.xpose.msra.mxu0 0.0
    %257 = vmatprep.subr.mxu0 0.0
    %258 = vmatpush1.xpose.msra.mxu0 0.0
    %259 = vmatprep.subr.mxu0 0.0
    %260 = vmatpush1.xpose.msra.mxu0 0.0
    %261 = vmatprep.subr.mxu0 0.0
    %262 = vmatpush1.xpose.msra.mxu0 0.0
    %263 = vmatprep.subr.mxu0 0.0
    %264 = vmatpush1.xpose.msra.mxu0 0.0
    %265 = vmatprep.subr.mxu0 0.0
    %266 = vmatpush1.xpose.msra.mxu0 0.0
    %267 = vmatprep.subr.mxu0 0.0
    %268 = vmatpush1.xpose.msra.mxu0 0.0
    %269 = vmatprep.subr.mxu0 0.0
    %270 = vmatpush1.xpose.msra.mxu0 0.0
    %271 = vmatprep.subr.mxu0 0.0
    %272 = vmatpush1.xpose.msra.mxu0 0.0
    %273 = vmatprep.subr.mxu0 0.0
    %274 = vmatpush1.xpose.msra.mxu0 0.0
    %275 = vmatprep.subr.mxu0 0.0
    %276 = vmatpush1.xpose.msra.mxu0 0.0
    %277 = vmatprep.subr.mxu0 0.0
    %278 = vmatpush1.xpose.msra.mxu0 0.0
    %279 = vmatprep.subr.mxu0 0.0
    %280 = vmatpush1.xpose.msra.mxu0 0.0
    %281 = vmatprep.subr.mxu0 0.0
    %282 = vmatpush1.xpose.msra.mxu0 0.0
    %283 = vmatprep.subr.mxu0 0.0
    %284 = vmatpush1.xpose.msra.mxu0 0.0
    %285 = vmatprep.mubr.f32.mxu0 0.0
    %286 = vmatmul.mubr.f32.gmra.mrb[0].mxu0 %v217
    %v287 = vpop.f32.mrb[0].mxu0
    %v288 = vadd.f32 0.0, %v287
    %v289 = vpop.f32.mrb[0].mxu0
    %290 = vdwg.mxu0
    %vm291 = vcmask 64512
    %v292 = vsel %vm291, %v211, -inf
    %293 = vmax.xlane.f32.xlu0 %v292
    %v294 = vpop.xlane.xlu0 %293
    %v295 = vsel %vm291, %v288, -inf
    %296 = vmax.xlane.f32.xlu0 %v295
    %v297 = vpop.xlane.xlu0 %296
    %v298 = vsub.f32 %v211, %v294
    %v299 = vsub.f32 %v288, %v297
    %v300 = vmul.f32 %v298, 1.442695
    %v301 = vpow.pop %v300
    %v302 = vmul.f32 %v299, 1.442695
    %v303 = vpow.pop %v302
    %v304 = vsel %vm291, %v301, 0.0
    %305 = vadd.xlane.f32.xlu0 %v304
    %v306 = vpop.xlane.xlu0 %305
    %v307 = vsel %vm291, %v303, 0.0
    %308 = vadd.xlane.f32.xlu0 %v307
    %v309 = vpop.xlane.xlu0 %308
    %v310 = vrcp.pop %v306
    %v311 = vrcp.pop %v309
    %v312 = vmul.f32 %v301, %v310
    %v313 = vmul.f32 %v303, %v311
    %314 = vrot.lane.b32.xlu0 %v128, 64
    %v315 = vpop.permute.xlu0 %314
    %v318 = vsel %vm291, %v312, 0
    %320 = vmatprep.subr.mxu0 0.0
    %321 = vmatpush1.msra.mxu0 %v315
    %322 = vmatprep.subr.mxu0 0.0
    %323 = vmatpush1.msra.mxu0 0.0
    %324 = vmatprep.subr.mxu0 0.0
    %325 = vmatpush1.msra.mxu0 0.0
    %326 = vmatprep.subr.mxu0 0.0
    %327 = vmatpush1.msra.mxu0 0.0
    %328 = vmatprep.subr.mxu0 0.0
    %329 = vmatpush1.msra.mxu0 0.0
    %330 = vmatprep.subr.mxu0 0.0
    %331 = vmatpush1.msra.mxu0 0.0
    %332 = vmatprep.subr.mxu0 0.0
    %333 = vmatpush1.msra.mxu0 0.0
    %334 = vmatprep.subr.mxu0 0.0
    %335 = vmatpush1.msra.mxu0 0.0
    %336 = vmatprep.subr.mxu0 0.0
    %337 = vmatpush1.msra.mxu0 0.0
    %338 = vmatprep.subr.mxu0 0.0
    %339 = vmatpush1.msra.mxu0 0.0
    %340 = vmatprep.subr.mxu0 0.0
    %341 = vmatpush1.msra.mxu0 0.0
    %342 = vmatprep.subr.mxu0 0.0
    %343 = vmatpush1.msra.mxu0 0.0
    %344 = vmatprep.subr.mxu0 0.0
    %345 = vmatpush1.msra.mxu0 0.0
    %346 = vmatprep.subr.mxu0 0.0
    %347 = vmatpush1.msra.mxu0 0.0
    %348 = vmatprep.subr.mxu0 0.0
    %349 = vmatpush1.msra.mxu0 0.0
    %350 = vmatprep.subr.mxu0 0.0
    %351 = vmatpush1.msra.mxu0 0.0
    %352 = vmatprep.subr.mxu0 0.0
    %353 = vmatpush1.msra.mxu0 0.0
    %354 = vmatprep.subr.mxu0 0.0
    %355 = vmatpush1.msra.mxu0 0.0
    %356 = vmatprep.subr.mxu0 0.0
    %357 = vmatpush1.msra.mxu0 0.0
    %358 = vmatprep.subr.mxu0 0.0
    %359 = vmatpush1.msra.mxu0 0.0
    %360 = vmatprep.subr.mxu0 0.0
    %361 = vmatpush1.msra.mxu0 0.0
    %362 = vmatprep.subr.mxu0 0.0
    %363 = vmatpush1.msra.mxu0 0.0
    %364 = vmatprep.subr.mxu0 0.0
    %365 = vmatpush1.msra.mxu0 0.0
    %366 = vmatprep.subr.mxu0 0.0
    %367 = vmatpush1.msra.mxu0 0.0
    %368 = vmatprep.subr.mxu0 0.0
    %369 = vmatpush1.msra.mxu0 0.0
    %370 = vmatprep.subr.mxu0 0.0
    %371 = vmatpush1.msra.mxu0 0.0
    %372 = vmatprep.subr.mxu0 0.0
    %373 = vmatpush1.msra.mxu0 0.0
    %374 = vmatprep.subr.mxu0 0.0
    %375 = vmatpush1.msra.mxu0 0.0
    %376 = vmatprep.subr.mxu0 0.0
    %377 = vmatpush1.msra.mxu0 0.0
    %378 = vmatprep.subr.mxu0 0.0
    %379 = vmatpush1.msra.mxu0 0.0
    %380 = vmatprep.subr.mxu0 0.0
    %381 = vmatpush1.msra.mxu0 0.0
    %382 = vmatprep.subr.mxu0 0.0
    %383 = vmatpush1.msra.mxu0 0.0
    %384 = vmatprep.mubr.f32.mxu0 0.0
    %385 = vmatmul.mubr.f32.gmra.mrb[0].mxu0 %v318
    %v386 = vpop.f32.mrb[0].mxu0
    %v387 = vadd.f32 0.0, %v386
    %v388 = vpop.f32.mrb[0].mxu0
    %389 = vdwg.mxu0
    %390 = vrot.lane.b32.xlu0 %v133, 64
    %v391 = vpop.permute.xlu0 %390
    %v394 = vsel %vm291, %v313, 0
    %396 = vmatprep.subr.mxu0 0.0
    %397 = vmatpush1.msra.mxu0 %v391
    %398 = vmatprep.subr.mxu0 0.0
    %399 = vmatpush1.msra.mxu0 0.0
    %400 = vmatprep.subr.mxu0 0.0
    %401 = vmatpush1.msra.mxu0 0.0
    %402 = vmatprep.subr.mxu0 0.0
    %403 = vmatpush1.msra.mxu0 0.0
    %404 = vmatprep.subr.mxu0 0.0
    %405 = vmatpush1.msra.mxu0 0.0
    %406 = vmatprep.subr.mxu0 0.0
    %407 = vmatpush1.msra.mxu0 0.0
    %408 = vmatprep.subr.mxu0 0.0
    %409 = vmatpush1.msra.mxu0 0.0
    %410 = vmatprep.subr.mxu0 0.0
    %411 = vmatpush1.msra.mxu0 0.0
    %412 = vmatprep.subr.mxu0 0.0
    %413 = vmatpush1.msra.mxu0 0.0
    %414 = vmatprep.subr.mxu0 0.0
    %415 = vmatpush1.msra.mxu0 0.0
    %416 = vmatprep.subr.mxu0 0.0
    %417 = vmatpush1.msra.mxu0 0.0
    %418 = vmatprep.subr.mxu0 0.0
    %419 = vmatpush1.msra.mxu0 0.0
    %420 = vmatprep.subr.mxu0 0.0
    %421 = vmatpush1.msra.mxu0 0.0
    %422 = vmatprep.subr.mxu0 0.0
    %423 = vmatpush1.msra.mxu0 0.0
    %424 = vmatprep.subr.mxu0 0.0
    %425 = vmatpush1.msra.mxu0 0.0
    %426 = vmatprep.subr.mxu0 0.0
    %427 = vmatpush1.msra.mxu0 0.0
    %428 = vmatprep.subr.mxu0 0.0
    %429 = vmatpush1.msra.mxu0 0.0
    %430 = vmatprep.subr.mxu0 0.0
    %431 = vmatpush1.msra.mxu0 0.0
    %432 = vmatprep.subr.mxu0 0.0
    %433 = vmatpush1.msra.mxu0 0.0
    %434 = vmatprep.subr.mxu0 0.0
    %435 = vmatpush1.msra.mxu0 0.0
    %436 = vmatprep.subr.mxu0 0.0
    %437 = vmatpush1.msra.mxu0 0.0
    %438 = vmatprep.subr.mxu0 0.0
    %439 = vmatpush1.msra.mxu0 0.0
    %440 = vmatprep.subr.mxu0 0.0
    %441 = vmatpush1.msra.mxu0 0.0
    %442 = vmatprep.subr.mxu0 0.0
    %443 = vmatpush1.msra.mxu0 0.0
    %444 = vmatprep.subr.mxu0 0.0
    %445 = vmatpush1.msra.mxu0 0.0
    %446 = vmatprep.subr.mxu0 0.0
    %447 = vmatpush1.msra.mxu0 0.0
    %448 = vmatprep.subr.mxu0 0.0
    %449 = vmatpush1.msra.mxu0 0.0
    %450 = vmatprep.subr.mxu0 0.0
    %451 = vmatpush1.msra.mxu0 0.0
    %452 = vmatprep.subr.mxu0 0.0
    %453 = vmatpush1.msra.mxu0 0.0
    %454 = vmatprep.subr.mxu0 0.0
    %455 = vmatpush1.msra.mxu0 0.0
    %456 = vmatprep.subr.mxu0 0.0
    %457 = vmatpush1.msra.mxu0 0.0
    %458 = vmatprep.subr.mxu0 0.0
    %459 = vmatpush1.msra.mxu0 0.0
    %460 = vmatprep.mubr.f32.mxu0 0.0
    %461 = vmatmul.mubr.f32.gmra.mrb[0].mxu0 %v394
    %v462 = vpop.f32.mrb[0].mxu0
    %v463 = vadd.f32 0.0, %v462
    %v464 = vpop.f32.mrb[0].mxu0
    %465 = vdwg.mxu0
    %466 = vst.msk [vmem:[#allocation7] sm:$0xff] %vm139, %v387
    %467 = vst.msk [vmem:[#allocation7 + $0x8] sm:$0xff] %vm139, %v463
    // Predicated region
    $region22: #{tpu_custom_call.1} parent=1 // pred_check
      _
    $region23: #{tpu_custom_call.1} parent=1 // pred_check_branch
      %469 = sbr.rel (0) target = $region25
    $region24: #{tpu_custom_call.1} parent=1 // pred_region
      %s471 = ssub.s32 256, 256
      %472 = vsyncadd [#allocation4], %s471
      %s473 = sshll.u32 [#allocation7], 4
      %s474 = int_to_ptr.vmem [resolvable:$true] %s473
      %479 = dma.vmem_to_hbm [thread:$0]  %s474, 256, %s3, [#allocation4], 128, 128, 8
    $region25: #{tpu_custom_call.1} parent=1 // pred_fallthru
      _
    // Predicated region
    $region26: #{tpu_custom_call.1} parent=1 // pred_check
      _
    $region27: #{tpu_custom_call.1} parent=1 // pred_check_branch
      %481 = sbr.rel (0) target = $region29
    $region28: #{tpu_custom_call.1} parent=1 // pred_region
      %482 = dma.done [#allocation4], 256
    $region29: #{tpu_custom_call.1} parent=1 // pred_fallthru
      _
    %483 = vsyncpa [#allocation3], 1
    %484 = vsyncpa [#allocation6], 1
    %485 = vsyncpa [#allocation4], 1

</llo_original>
